<compile_context>
chip_gen: v7x
topology: tpu7x:2x2x1
jax: 0.10.0
libtpu: 0.0.40
codegen_flags: <defaults>
</compile_context>

<pallas_src>
import functools
import math

import jax
import jax.numpy as jnp
import numpy as np
from jax import lax
from jax.experimental import pallas as pl
from jax.experimental.pallas import tpu as pltpu


def _dfpnet_head_kernel(x_ref, a1_ref, w1_ref, a2_ref, w2_ref, cent_t_ref, inv_cn_ref,
                        out_ref, gap_acc,
                        *, hw, thw, c, e, k, mask_hw):
    """Grid = (batch_blocks, hw_blocks); hw is the trailing ('arbitrary') reduction axis."""
    j = pl.program_id(1)

    @pl.when(j == 0)
    def _():
        gap_acc[...] = jnp.zeros_like(gap_acc)

    # ---- partial GAP: sum over this HW chunk (lane reduce; C lands on lanes) ----
    x = x_ref[...]                                           # (TB, C, THW)
    if mask_hw:
        # Ragged final HW chunk: mask out-of-range lanes before summing.
        idx = lax.broadcasted_iota(jnp.int32, x.shape, 2)
        valid = (j * thw + idx) < hw
        x = jnp.where(valid, x, jnp.zeros((), x.dtype))
    gap_acc[...] += jnp.sum(x, axis=-1, dtype=jnp.float32)   # (TB, C)

    @pl.when(j == pl.num_programs(1) - 1)
    def _():
        gap = gap_acc[...] * jnp.float32(1.0 / hw)           # (TB, C)

        # ---- embeddingLayer: PReLU -> Linear(C, C//16) -> PReLU -> Linear(C//16, E) ----
        a1 = a1_ref[0]                                       # SMEM scalar
        h = jnp.where(gap >= 0, gap, a1 * gap)               # PReLU (single alpha)
        h = jnp.dot(h, w1_ref[...], preferred_element_type=jnp.float32)
        a2 = a2_ref[0]
        h = jnp.where(h >= 0, h, a2 * h)                     # PReLU
        embed = jnp.dot(h, w2_ref[...], preferred_element_type=jnp.float32)  # (TB, E)

        # ---- raw dot product vs. centroids (pre-transposed to (E, K)) ----
        dot = jnp.dot(embed, cent_t_ref[...], preferred_element_type=jnp.float32)  # (TB, K)

        # ---- cosine from the same dot product (no second matmul) ----
        # F.normalize(p=2, eps=1e-12): divide by max(||.||, eps) == rsqrt(max(ss, eps^2))
        eps2 = jnp.float32(1e-24)
        e_ss = jnp.sum(embed * embed, axis=1, keepdims=True)
        inv_e = lax.rsqrt(jnp.maximum(e_ss, eps2))           # EUP slot
        cos = (dot * inv_e) * inv_cn_ref[...]                # (1, K) row broadcast

        # ---- pack all outputs into one lane-dense slab [gap | embed | dot | cos] ----
        out_ref[:, 0:c] = gap.astype(out_ref.dtype)
        out_ref[:, c:c + e] = embed.astype(out_ref.dtype)
        out_ref[:, c + e:c + e + k] = dot
        out_ref[:, c + e + k:c + e + 2 * k] = cos


def dfpnet_head(x_feat, a1, w1, a2, w2, centroids, *, tb=None, thw=None):
    """x_feat: (B, C, H, W) backbone output; returns dict like DFPNet.forward."""
    B, C, H, W = x_feat.shape
    HW = H * W
    hidden = w1.shape[1]
    E = w2.shape[1]
    K = centroids.shape[0]
    kout = C + E + 2 * K

    # NCHW stays put: merging the trailing (H, W) dims is free layout plumbing.
    x = x_feat.reshape(B, C, HW)
    itemsize = x.dtype.itemsize
    row_bytes = C * HW * itemsize

    # ---- per-generation VMEM budget ----
    try:
        phys_vmem = int(pltpu.get_tpu_info().vmem_capacity_bytes)
    except Exception:
        phys_vmem = 64 * 1024 * 1024                         # conservative (v7x per-TC)
    vmem_limit = min(64 * 1024 * 1024, phys_vmem * 3 // 4)   # ~48 MiB v7x, 64 MiB v5e/v6e
    x_buf_budget = min(16 * 1024 * 1024, vmem_limit // 4)    # per x buffer (double-buffered)

    # ---- choose (tb, thw) ----
    if 8 * row_bytes <= x_buf_budget:
        thw_def = HW                                          # whole HW per step
        tb_def = (x_buf_budget // row_bytes) // 8 * 8
    else:
        # Large feature map: floor tb at 8 and chunk HW in 128-lane multiples.
        tb_def = 8
        thw_def = max(128, (x_buf_budget // (8 * C * itemsize)) // 128 * 128)
        thw_def = min(thw_def, ((HW + 127) // 128) * 128)
    if tb is None:
        tb = tb_def
    if thw is None:
        thw = thw_def

    # Keep >= 2 batch programs when B >= 16 so v7x megacore sharding engages.
    if B >= 16:
        tb = min(tb, max(8, (B // 2) // 8 * 8))
    # Sublane rule for the 2-D output block: tb % 8 == 0, or tb == full batch dim.
    if tb >= B:
        tb = B
    else:
        tb = max(8, tb // 8 * 8)

    if thw >= HW:
        thw = HW
    nb = int(pl.cdiv(B, tb))
    nhw = int(pl.cdiv(HW, thw))
    if nhw == 1:
        thw = HW
    mask_hw = (nhw > 1) and (HW % thw != 0)

    # Precompute centroid transpose + inverse norms once, outside the grid.
    cent_f32 = centroids.astype(jnp.float32)
    cent_t = cent_f32.T                                                   # (E, K)
    inv_cn = (1.0 / jnp.maximum(
        jnp.sqrt(jnp.sum(cent_f32 * cent_f32, axis=1)), 1e-12)).reshape(1, K)

    a1s = jnp.asarray(a1, jnp.float32).reshape(1)
    a2s = jnp.asarray(a2, jnp.float32).reshape(1)

    kernel = functools.partial(_dfpnet_head_kernel, hw=HW, thw=thw,
                               c=C, e=E, k=K, mask_hw=mask_hw)

    smem_spec = pl.BlockSpec(memory_space=pltpu.MemorySpace.SMEM)

    cost = pl.CostEstimate(
        flops=int(B * (HW * C + 2 * (C * hidden + hidden * E + E * K) + 4 * E + 4 * K)),
        transcendentals=int(B),
        bytes_accessed=int(B * HW * C * itemsize + B * kout * 4
                           + (C * hidden + hidden * E + E * K + K) * 4),
    )

    packed = pl.pallas_call(
        kernel,
        out_shape=jax.ShapeDtypeStruct((B, kout), jnp.float32),
        grid=(nb, nhw),
        in_specs=[
            pl.BlockSpec((tb, C, thw), lambda i, j: (i, 0, j)),  # x: streamed batch x HW
            smem_spec,                                           # a1 (SMEM scalar)
            pl.BlockSpec((C, hidden), lambda i, j: (0, 0)),      # w1: VMEM-resident
            smem_spec,                                           # a2 (SMEM scalar)
            pl.BlockSpec((hidden, E), lambda i, j: (0, 0)),      # w2: resident
            pl.BlockSpec((E, K), lambda i, j: (0, 0)),           # centroids^T: resident
            pl.BlockSpec((1, K), lambda i, j: (0, 0)),           # 1/||c|| row: resident
        ],
        out_specs=pl.BlockSpec((tb, kout), lambda i, j: (i, 0)),  # lane-dense packed slab
        scratch_shapes=[pltpu.VMEM((tb, C), jnp.float32)],        # GAP accumulator
        compiler_params=pltpu.CompilerParams(
            dimension_semantics=("parallel", "arbitrary"),
            vmem_limit_bytes=int(vmem_limit),
        ),
        cost_estimate=cost,
    )(x, a1s, w1, a2s, w2, cent_t, inv_cn)

    return {
        "gap": packed[:, :C],
        "embed_fea": packed[:, C:C + E],
        "dotproduct_fea2cen": packed[:, C + E:C + E + K],
        "cosine_fea2cen": packed[:, C + E + K:],
    }


def _reference(x_feat, a1, w1, a2, w2, centroids):
    """Plain-JAX reference mirroring the PyTorch forward."""
    B, C, H, W = x_feat.shape
    gap = jnp.mean(x_feat.reshape(B, C, H * W), axis=-1)
    h = jnp.where(gap >= 0, gap, a1[0, 0] * gap)
    h = h @ w1
    h = jnp.where(h >= 0, h, a2[0, 0] * h)
    embed = h @ w2
    eps = 1e-12
    e_n = embed / jnp.maximum(jnp.linalg.norm(embed, axis=1, keepdims=True), eps)
    c_n = centroids / jnp.maximum(jnp.linalg.norm(centroids, axis=1, keepdims=True), eps)
    return gap, embed, embed @ centroids.T, e_n @ c_n.T


if __name__ == "__main__":
    # Small, DFPNet-consistent shapes: feat_dim must be divisible by 16.
    B, C_feat, H, W = 2, 64, 8, 8          # backbone feature map
    hidden = C_feat // 16                  # 4
    embed_dim = 32
    num_classes = 16

    key = jax.random.PRNGKey(0)
    kx, kw1, kw2, kc = jax.random.split(key, 4)

    x_feat = jax.random.normal(kx, (B, C_feat, H, W), dtype=jnp.float32)

    # PReLU alphas (PyTorch default init = 0.25, single parameter each)
    a1 = jnp.full((1, 1), 0.25, dtype=jnp.float32)
    a2 = jnp.full((1, 1), 0.25, dtype=jnp.float32)

    # Linear weights, bias=False.  PyTorch stores (out, in); we pre-transpose to (in, out).
    b1 = 1.0 / math.sqrt(C_feat)
    w1 = jax.random.uniform(kw1, (C_feat, hidden), minval=-b1, maxval=b1, dtype=jnp.float32)
    b2 = 1.0 / math.sqrt(hidden)
    w2 = jax.random.uniform(kw2, (hidden, embed_dim), minval=-b2, maxval=b2, dtype=jnp.float32)

    # centroids: xavier_uniform_ over (num_classes, embed_dim)
    bc = math.sqrt(6.0 / (num_classes + embed_dim))
    centroids = jax.random.uniform(kc, (num_classes, embed_dim),
                                   minval=-bc, maxval=bc, dtype=jnp.float32)

    out = dfpnet_head(x_feat, a1, w1, a2, w2, centroids)
    jax.block_until_ready(out)

    ref = _reference(x_feat, a1, w1, a2, w2, centroids)
    names = ["gap", "embed_fea", "dotproduct_fea2cen", "cosine_fea2cen"]
    for name, r in zip(names, ref):
        np.testing.assert_allclose(np.asarray(out[name]), np.asarray(r),
                                   rtol=1e-5, atol=1e-5)

    print("KERNEL_OK")
</pallas_src>

<mosaic_0001>
module attributes {stable_mosaic.version = 11 : i64} {
  func.func @_dfpnet_head_kernel(%arg0: i32, %arg1: i32, %arg2: memref<2x64x64xf32, #tpu.memory_space<vmem>>, %arg3: memref<1xf32, #tpu.memory_space<smem>>, %arg4: memref<64x4xf32, #tpu.memory_space<vmem>>, %arg5: memref<1xf32, #tpu.memory_space<smem>>, %arg6: memref<4x32xf32, #tpu.memory_space<vmem>>, %arg7: memref<32x16xf32, #tpu.memory_space<vmem>>, %arg8: memref<1x16xf32, #tpu.memory_space<vmem>>, %arg9: memref<2x128xf32, #tpu.memory_space<vmem>>, %arg10: memref<2x64xf32, #tpu.memory_space<vmem>>) attributes {dimension_semantics = [#tpu.dimension_semantics<parallel>, #tpu.dimension_semantics<arbitrary>], iteration_bounds = array<i64: 1, 1>, scalar_prefetch = 0 : i64, scratch_operands = 1 : i64, tpu.core_type = #tpu.core_type<tc>, window_params = [{transform_indices = @transform_0, window_bounds = array<i64: 2, 64, 64>}, {transform_indices = @transform_1, window_bounds = array<i64: 1>}, {pipeline_mode = #tpu.pipeline_mode<synchronous>, transform_indices = @transform_2, window_bounds = array<i64: 64, 4>}, {transform_indices = @transform_3, window_bounds = array<i64: 1>}, {pipeline_mode = #tpu.pipeline_mode<synchronous>, transform_indices = @transform_4, window_bounds = array<i64: 4, 32>}, {pipeline_mode = #tpu.pipeline_mode<synchronous>, transform_indices = @transform_5, window_bounds = array<i64: 32, 16>}, {pipeline_mode = #tpu.pipeline_mode<synchronous>, transform_indices = @transform_6, window_bounds = array<i64: 1, 16>}, {transform_indices = @transform_7, window_bounds = array<i64: 2, 128>}]} {
    %c0_i32 = arith.constant 0 : i32
    %0 = arith.cmpi eq, %arg1, %c0_i32 : i32
    %1 = arith.extui %0 : i1 to i32
    %c0_i32_0 = arith.constant 0 : i32
    %2 = arith.cmpi ne, %1, %c0_i32_0 : i32
    scf.if %2 {
      %cst_9 = arith.constant 0.000000e+00 : f32
      %11 = vector.broadcast %cst_9 : f32 to vector<2x64xf32>
      %c0_10 = arith.constant 0 : index
      %c0_11 = arith.constant 0 : index
      %12 = vector.load %arg10[%c0_10, %c0_11] : memref<2x64xf32, #tpu.memory_space<vmem>>, vector<2x64xf32>
      tpu.vector_store %arg10[%c0_10, %c0_11], %11 {strides = array<i32>} : memref<2x64xf32, #tpu.memory_space<vmem>>, vector<2x64xf32>,
    } else {
    }
    %c0 = arith.constant 0 : index
    %c0_1 = arith.constant 0 : index
    %c0_2 = arith.constant 0 : index
    %3 = vector.load %arg2[%c0, %c0_1, %c0_2] : memref<2x64x64xf32, #tpu.memory_space<vmem>>, vector<2x64x64xf32>
    %c0_3 = arith.constant 0 : index
    %c0_4 = arith.constant 0 : index
    %4 = vector.load %arg10[%c0_3, %c0_4] : memref<2x64xf32, #tpu.memory_space<vmem>>, vector<2x64xf32>
    %cst = arith.constant dense<0.000000e+00> : vector<2x64xf32>
    %5 = vector.multi_reduction <add>, %3, %cst [2] : vector<2x64x64xf32> to vector<2x64xf32>
    %6 = arith.addf %4, %5 : vector<2x64xf32>
    %c0_5 = arith.constant 0 : index
    %c0_6 = arith.constant 0 : index
    %7 = vector.load %arg10[%c0_5, %c0_6] : memref<2x64xf32, #tpu.memory_space<vmem>>, vector<2x64xf32>
    tpu.vector_store %arg10[%c0_5, %c0_6], %6 {strides = array<i32>} : memref<2x64xf32, #tpu.memory_space<vmem>>, vector<2x64xf32>,
    %c0_i32_7 = arith.constant 0 : i32
    %8 = arith.cmpi eq, %arg1, %c0_i32_7 : i32
    %9 = arith.extui %8 : i1 to i32
    %c0_i32_8 = arith.constant 0 : i32
    %10 = arith.cmpi ne, %9, %c0_i32_8 : i32
    scf.if %10 {
      %c0_9 = arith.constant 0 : index
      %c0_10 = arith.constant 0 : index
      %11 = vector.load %arg10[%c0_9, %c0_10] : memref<2x64xf32, #tpu.memory_space<vmem>>, vector<2x64xf32>
      %cst_11 = arith.constant 1.562500e-02 : f32
      %12 = vector.broadcast %cst_11 : f32 to vector<2x64xf32>
      %13 = arith.mulf %11, %12 : vector<2x64xf32>
      %c0_12 = arith.constant 0 : index
      %14 = memref.load %arg3[%c0_12] : memref<1xf32, #tpu.memory_space<smem>>
      %cst_13 = arith.constant 0.000000e+00 : f32
      %15 = vector.broadcast %cst_13 : f32 to vector<2x64xf32>
      %16 = arith.cmpf oge, %13, %15 : vector<2x64xf32>
      %17 = vector.broadcast %14 : f32 to vector<2x64xf32>
      %18 = arith.mulf %17, %13 : vector<2x64xf32>
      %19 = arith.select %16, %13, %18 : vector<2x64xi1>, vector<2x64xf32>
      %c0_14 = arith.constant 0 : index
      %c0_15 = arith.constant 0 : index
      %20 = vector.load %arg4[%c0_14, %c0_15] : memref<64x4xf32, #tpu.memory_space<vmem>>, vector<64x4xf32>
      %cst_16 = arith.constant dense<0.000000e+00> : vector<2x4xf32>
      %21 = tpu.matmul %19, %20, %cst_16 {dimension_numbers = #tpu.dot_dimension_numbers<[1], [0], [0], [1], [0, 0, 1, 1], [], []>} : vector<2x64xf32>, vector<64x4xf32>, vector<2x4xf32> -> vector<2x4xf32>
      %c0_17 = arith.constant 0 : index
      %22 = memref.load %arg5[%c0_17] : memref<1xf32, #tpu.memory_space<smem>>
      %cst_18 = arith.constant 0.000000e+00 : f32
      %23 = vector.broadcast %cst_18 : f32 to vector<2x4xf32>
      %24 = arith.cmpf oge, %21, %23 : vector<2x4xf32>
      %25 = vector.broadcast %22 : f32 to vector<2x4xf32>
      %26 = arith.mulf %25, %21 : vector<2x4xf32>
      %27 = arith.select %24, %21, %26 : vector<2x4xi1>, vector<2x4xf32>
      %c0_19 = arith.constant 0 : index
      %c0_20 = arith.constant 0 : index
      %28 = vector.load %arg6[%c0_19, %c0_20] : memref<4x32xf32, #tpu.memory_space<vmem>>, vector<4x32xf32>
      %cst_21 = arith.constant dense<0.000000e+00> : vector<2x32xf32>
      %29 = tpu.matmul %27, %28, %cst_21 {dimension_numbers = #tpu.dot_dimension_numbers<[1], [0], [0], [1], [0, 0, 1, 1], [], []>} : vector<2x4xf32>, vector<4x32xf32>, vector<2x32xf32> -> vector<2x32xf32>
      %c0_22 = arith.constant 0 : index
      %c0_23 = arith.constant 0 : index
      %30 = vector.load %arg7[%c0_22, %c0_23] : memref<32x16xf32, #tpu.memory_space<vmem>>, vector<32x16xf32>
      %cst_24 = arith.constant dense<0.000000e+00> : vector<2x16xf32>
      %31 = tpu.matmul %29, %30, %cst_24 {dimension_numbers = #tpu.dot_dimension_numbers<[1], [0], [0], [1], [0, 0, 1, 1], [], []>} : vector<2x32xf32>, vector<32x16xf32>, vector<2x16xf32> -> vector<2x16xf32>
      %32 = arith.mulf %29, %29 : vector<2x32xf32>
      %cst_25 = arith.constant dense<0.000000e+00> : vector<2xf32>
      %33 = vector.multi_reduction <add>, %32, %cst_25 [1] : vector<2x32xf32> to vector<2xf32>
      %34 = vector.shape_cast %33 : vector<2xf32> to vector<2x1xf32>
      %cst_26 = arith.constant 1.000000e-24 : f32
      %35 = vector.broadcast %cst_26 : f32 to vector<2x1xf32>
      %36 = arith.maximumf %34, %35 : vector<2x1xf32>
      %37 = math.rsqrt %36 : vector<2x1xf32>
      %38 = vector.broadcast %37 : vector<2x1xf32> to vector<2x16xf32>
      %39 = arith.mulf %31, %38 : vector<2x16xf32>
      %c0_27 = arith.constant 0 : index
      %c0_28 = arith.constant 0 : index
      %40 = vector.load %arg8[%c0_27, %c0_28] : memref<1x16xf32, #tpu.memory_space<vmem>>, vector<1x16xf32>
      %41 = vector.broadcast %40 : vector<1x16xf32> to vector<2x16xf32>
      %42 = arith.mulf %39, %41 : vector<2x16xf32>
      %c0_29 = arith.constant 0 : index
      %c0_30 = arith.constant 0 : index
      %43 = vector.load %arg9[%c0_29, %c0_30] : memref<2x128xf32, #tpu.memory_space<vmem>>, vector<2x64xf32>
      tpu.vector_store %arg9[%c0_29, %c0_30], %13 {strides = array<i32>} : memref<2x128xf32, #tpu.memory_space<vmem>>, vector<2x64xf32>,
      %c0_31 = arith.constant 0 : index
      %c64 = arith.constant 64 : index
      %44 = vector.load %arg9[%c0_31, %c64] : memref<2x128xf32, #tpu.memory_space<vmem>>, vector<2x32xf32>
      tpu.vector_store %arg9[%c0_31, %c64], %29 {strides = array<i32>} : memref<2x128xf32, #tpu.memory_space<vmem>>, vector<2x32xf32>,
      %c0_32 = arith.constant 0 : index
      %c96 = arith.constant 96 : index
      %45 = vector.load %arg9[%c0_32, %c96] : memref<2x128xf32, #tpu.memory_space<vmem>>, vector<2x16xf32>
      tpu.vector_store %arg9[%c0_32, %c96], %31 {strides = array<i32>} : memref<2x128xf32, #tpu.memory_space<vmem>>, vector<2x16xf32>,
      %c0_33 = arith.constant 0 : index
      %c112 = arith.constant 112 : index
      %46 = vector.load %arg9[%c0_33, %c112] : memref<2x128xf32, #tpu.memory_space<vmem>>, vector<2x16xf32>
      tpu.vector_store %arg9[%c0_33, %c112], %42 {strides = array<i32>} : memref<2x128xf32, #tpu.memory_space<vmem>>, vector<2x16xf32>,
    } else {
    }
    return
  }
  func.func @transform_0(%arg0: i32, %arg1: i32) -> (i32, i32, i32) {
    %c0_i32 = arith.constant 0 : i32
    %c0_i32_0 = arith.constant 0 : i32
    return %arg0, %c0_i32, %arg1 : i32, i32, i32
  }
  func.func @transform_1(%arg0: i32, %arg1: i32) -> i32 {
    %c0_i32 = arith.constant 0 : i32
    %c0_i32_0 = arith.constant 0 : i32
    return %c0_i32 : i32
  }
  func.func @transform_2(%arg0: i32, %arg1: i32) -> (i32, i32) {
    %c0_i32 = arith.constant 0 : i32
    %c0_i32_0 = arith.constant 0 : i32
    %c0_i32_1 = arith.constant 0 : i32
    return %c0_i32, %c0_i32_0 : i32, i32
  }
  func.func @transform_3(%arg0: i32, %arg1: i32) -> i32 {
    %c0_i32 = arith.constant 0 : i32
    %c0_i32_0 = arith.constant 0 : i32
    return %c0_i32 : i32
  }
  func.func @transform_4(%arg0: i32, %arg1: i32) -> (i32, i32) {
    %c0_i32 = arith.constant 0 : i32
    %c0_i32_0 = arith.constant 0 : i32
    %c0_i32_1 = arith.constant 0 : i32
    return %c0_i32, %c0_i32_0 : i32, i32
  }
  func.func @transform_5(%arg0: i32, %arg1: i32) -> (i32, i32) {
    %c0_i32 = arith.constant 0 : i32
    %c0_i32_0 = arith.constant 0 : i32
    %c0_i32_1 = arith.constant 0 : i32
    return %c0_i32, %c0_i32_0 : i32, i32
  }
  func.func @transform_6(%arg0: i32, %arg1: i32) -> (i32, i32) {
    %c0_i32 = arith.constant 0 : i32
    %c0_i32_0 = arith.constant 0 : i32
    %c0_i32_1 = arith.constant 0 : i32
    return %c0_i32, %c0_i32_0 : i32, i32
  }
  func.func @transform_7(%arg0: i32, %arg1: i32) -> (i32, i32) {
    %c0_i32 = arith.constant 0 : i32
    %c0_i32_0 = arith.constant 0 : i32
    return %arg0, %c0_i32 : i32, i32
  }
}

</mosaic_0001>

<llo_original>
// kernel: tpu_custom_call.1
$region0: #{tpu_custom_call.1}
  #allocation0 [shape = 'u32[]', space=smem, size = 0x4, offset = 0x4, fixed_abs, tag = 'smem constant byte address 0x4 - core index']
  #allocation1 [shape = 'u32[144,128]{1,0:T(1,128)}', space=vmem, size = 0x12000, scoped, tag = 'internal scratch']
  #allocation2 [shape = 'f32[2,64]{1,0:T(2,128)}', space=vmem, size = 0x400, scoped, tag = 'scratch operand']
  #allocation3 [shape = 'f32[1]{0:T(128)S(6)}', space=smem, size = 0x200, scoped, tag = 'scoped memory for tpu_custom_call.1']
  #allocation4 [shape = 'f32[1]{0:T(128)S(6)}', space=smem, size = 0x200, scoped, tag = 'scoped memory for tpu_custom_call.1']
  %s0 = inlined_call_operand.hbm [shape: f32[2,64,64], index: 0, kind: input, shape index: {}]
  %s1 = inlined_call_operand.<no memory space> [shape: f32[1], index: 1, kind: input, shape index: {}]
  %s2 = inlined_call_operand.vmem [shape: f32[64,4], index: 2, kind: input, shape index: {}]
  %s3 = inlined_call_operand.<no memory space> [shape: f32[1], index: 3, kind: input, shape index: {}]
  %s4 = inlined_call_operand.vmem [shape: f32[4,32], index: 4, kind: input, shape index: {}]
  %s5 = inlined_call_operand.vmem [shape: f32[32,16], index: 5, kind: input, shape index: {}]
  %s6 = inlined_call_operand.vmem [shape: f32[1,16], index: 6, kind: input, shape index: {}]
  %s7 = inlined_call_operand.hbm [shape: f32[2,128], index: 7, kind: output, shape index: {}]
  %s8 = sld [smem:[#allocation0]]
  $region50: #{tpu_custom_call.1} parent=0
    _
  %s10 = ssub.s32 1, %s8
  %s11 = scalar_select 0, %s10, %s8
  %12 = sst [smem:[#allocation3]] %s1
  %13 = sst [smem:[#allocation4]] %s3
  $region1: #{tpu_custom_call.1} parent=0
    #allocation5 [shape = 'u8[65536]{0}', space=vmem, size = 0x10000, scoped, tag = 'input window, operand 0, single buffered']
    #allocation6 [shape = 's32[1]{0}', space=sflag, size = 0x4, scoped, tag = 'scoped memory for tpu_custom_call.1']
    #allocation7 [shape = 's32[1]{0}', space=sflag, size = 0x4, scoped, tag = 'scoped memory for tpu_custom_call.1']
    #allocation8 [shape = 'u8[1024]{0}', space=vmem, size = 0x400, scoped, tag = 'output window, operand 0, single buffered']
    %14 = vsyncpa [#allocation6], 0
    %15 = vsyncpa [#allocation7], 0
    // Predicated region
    $region2: #{tpu_custom_call.1} parent=1 // pred_check
      _
    $region3: #{tpu_custom_call.1} parent=1 // pred_check_branch
      %17 = sbr.rel (0) target = $region5
    $region4: #{tpu_custom_call.1} parent=1 // pred_region
      %s19 = ssub.s32 2048, 2048
      %20 = vsyncadd [#allocation6], %s19
      %s21 = sshll.u32 [#allocation5], 4
      %s22 = int_to_ptr.vmem [resolvable:$true] %s21
      %27 = dma.hbm_to_vmem [thread:$0]  %s0, 2048, %s22, [#allocation6], 128, 128, 8
    $region5: #{tpu_custom_call.1} parent=1 // pred_fallthru
      _
    // Predicated region
    $region6: #{tpu_custom_call.1} parent=1 // pred_check
      _
    $region7: #{tpu_custom_call.1} parent=1 // pred_check_branch
      %29 = sbr.rel (0) target = $region9
    $region8: #{tpu_custom_call.1} parent=1 // pred_region
      _
    $region9: #{tpu_custom_call.1} parent=1 // pred_fallthru
      _
    // Predicated region
    $region10: #{tpu_custom_call.1} parent=1 // pred_check
      _
    $region11: #{tpu_custom_call.1} parent=1 // pred_check_branch
      %31 = sbr.rel (0) target = $region13
    $region12: #{tpu_custom_call.1} parent=1 // pred_region
      _
    $region13: #{tpu_custom_call.1} parent=1 // pred_fallthru
      _
    // Predicated region
    $region14: #{tpu_custom_call.1} parent=1 // pred_check
      _
    $region15: #{tpu_custom_call.1} parent=1 // pred_check_branch
      %33 = sbr.rel (0) target = $region17
    $region16: #{tpu_custom_call.1} parent=1 // pred_region
      _
    $region17: #{tpu_custom_call.1} parent=1 // pred_fallthru
      _
    // Predicated region
    $region18: #{tpu_custom_call.1} parent=1 // pred_check
      _
    $region19: #{tpu_custom_call.1} parent=1 // pred_check_branch
      %35 = sbr.rel (0) target = $region21
    $region20: #{tpu_custom_call.1} parent=1 // pred_region
      _
    $region21: #{tpu_custom_call.1} parent=1 // pred_fallthru
      _
    // Predicated region
    $region22: #{tpu_custom_call.1} parent=1 // pred_check
      _
    $region23: #{tpu_custom_call.1} parent=1 // pred_check_branch
      %37 = sbr.rel (0) target = $region25
    $region24: #{tpu_custom_call.1} parent=1 // pred_region
      _
    $region25: #{tpu_custom_call.1} parent=1 // pred_fallthru
      _
    // Predicated region
    $region26: #{tpu_custom_call.1} parent=1 // pred_check
      _
    $region27: #{tpu_custom_call.1} parent=1 // pred_check_branch
      %39 = sbr.rel (0) target = $region29
    $region28: #{tpu_custom_call.1} parent=1 // pred_region
      _
    $region29: #{tpu_custom_call.1} parent=1 // pred_fallthru
      _
    // Predicated region
    $region30: #{tpu_custom_call.1} parent=1 // pred_check
      _
    $region31: #{tpu_custom_call.1} parent=1 // pred_check_branch
      %41 = sbr.rel (0) target = $region33
    $region32: #{tpu_custom_call.1} parent=1 // pred_region
      %42 = dma.done [#allocation6], 2048
    $region33: #{tpu_custom_call.1} parent=1 // pred_fallthru
      _
    %p43 = scmp.eq.s32.totalorder 0, 0
    // Predicated region
    $region34: #{tpu_custom_call.1} parent=1 // pred_check
      %p44 = pneg %p43
    $region35: #{tpu_custom_call.1} parent=1 // pred_check_branch
      %46 = sbr.rel (%p44) target = $region37
    $region36: #{tpu_custom_call.1} parent=1 // pred_region
      %vm47 = vcmask 517120
      %48 = vst.msk [vmem:[#allocation2] sm:$0x3] %vm47, 0.0
    $region37: #{tpu_custom_call.1} parent=1 // pred_fallthru
      _
    %v49 = vld [vmem:[#allocation5] sm:$0xff]
    %v50 = vld [vmem:[#allocation5 + $0x8] sm:$0xff]
    %v51 = vld [vmem:[#allocation5 + $0x10] sm:$0xff]
    %v52 = vld [vmem:[#allocation5 + $0x18] sm:$0xff]
    %v53 = vld [vmem:[#allocation5 + $0x20] sm:$0xff]
    %v54 = vld [vmem:[#allocation5 + $0x28] sm:$0xff]
    %v55 = vld [vmem:[#allocation5 + $0x30] sm:$0xff]
    %v56 = vld [vmem:[#allocation5 + $0x38] sm:$0xff]
    %v57 = vld [vmem:[#allocation5 + $0x40] sm:$0xff]
    %v58 = vld [vmem:[#allocation5 + $0x48] sm:$0xff]
    %v59 = vld [vmem:[#allocation5 + $0x50] sm:$0xff]
    %v60 = vld [vmem:[#allocation5 + $0x58] sm:$0xff]
    %v61 = vld [vmem:[#allocation5 + $0x60] sm:$0xff]
    %v62 = vld [vmem:[#allocation5 + $0x68] sm:$0xff]
    %v63 = vld [vmem:[#allocation5 + $0x70] sm:$0xff]
    %v64 = vld [vmem:[#allocation5 + $0x78] sm:$0xff]
    %v65 = vld [vmem:[#allocation2] sm:$0x3]
    %vm66 = vcmask 523264
    %v67 = vsel %vm66, %v49, 0.0
    %68 = vadd.xlane.f32.xlu0 %v67
    %v69 = vpop.xlane.xlu0 %68
    %v70 = vsel %vm66, %v50, 0.0
    %71 = vadd.xlane.f32.xlu0 %v70
    %v72 = vpop.xlane.xlu0 %71
    %v73 = vsel %vm66, %v51, 0.0
    %74 = vadd.xlane.f32.xlu0 %v73
    %v75 = vpop.xlane.xlu0 %74
    %v76 = vsel %vm66, %v52, 0.0
    %77 = vadd.xlane.f32.xlu0 %v76
    %v78 = vpop.xlane.xlu0 %77
    %v79 = vsel %vm66, %v53, 0.0
    %80 = vadd.xlane.f32.xlu0 %v79
    %v81 = vpop.xlane.xlu0 %80
    %v82 = vsel %vm66, %v54, 0.0
    %83 = vadd.xlane.f32.xlu0 %v82
    %v84 = vpop.xlane.xlu0 %83
    %v85 = vsel %vm66, %v55, 0.0
    %86 = vadd.xlane.f32.xlu0 %v85
    %v87 = vpop.xlane.xlu0 %86
    %v88 = vsel %vm66, %v56, 0.0
    %89 = vadd.xlane.f32.xlu0 %v88
    %v90 = vpop.xlane.xlu0 %89
    %v91 = vsel %vm66, %v57, 0.0
    %92 = vadd.xlane.f32.xlu0 %v91
    %v93 = vpop.xlane.xlu0 %92
    %v94 = vsel %vm66, %v58, 0.0
    %95 = vadd.xlane.f32.xlu0 %v94
    %v96 = vpop.xlane.xlu0 %95
    %v97 = vsel %vm66, %v59, 0.0
    %98 = vadd.xlane.f32.xlu0 %v97
    %v99 = vpop.xlane.xlu0 %98
    %v100 = vsel %vm66, %v60, 0.0
    %101 = vadd.xlane.f32.xlu0 %v100
    %v102 = vpop.xlane.xlu0 %101
    %v103 = vsel %vm66, %v61, 0.0
    %104 = vadd.xlane.f32.xlu0 %v103
    %v105 = vpop.xlane.xlu0 %104
    %v106 = vsel %vm66, %v62, 0.0
    %107 = vadd.xlane.f32.xlu0 %v106
    %v108 = vpop.xlane.xlu0 %107
    %v109 = vsel %vm66, %v63, 0.0
    %110 = vadd.xlane.f32.xlu0 %v109
    %v111 = vpop.xlane.xlu0 %110
    %v112 = vsel %vm66, %v64, 0.0
    %113 = vadd.xlane.f32.xlu0 %v112
    %v114 = vpop.xlane.xlu0 %113
    %v131 = vlaneseq
    %v132 = vand.u32 %v131, 127
    %v133 = vlaneseq
    %v134 = vshrl.u32 %v133, 7
    %v135 = vsub.s32 %v132, %v134
    %v136 = vrot.slane %v69, %v135
    %v137 = vadd.s32 %v132, 4294967288
    %v138 = vlaneseq
    %v139 = vshrl.u32 %v138, 7
    %v140 = vsub.s32 %v137, %v139
    %v141 = vrot.slane %v72, %v140
    %vm142 = vcmask 130112
    %v143 = vsel %vm142, %v141, %v136
    %v144 = vadd.s32 %v132, 4294967280
    %v145 = vlaneseq
    %v146 = vshrl.u32 %v145, 7
    %v147 = vsub.s32 %v144, %v146
    %v148 = vrot.slane %v75, %v147
    %vm149 = vcmask 195712
    %v150 = vsel %vm149, %v148, %v143
    %v151 = vadd.s32 %v132, 4294967272
    %v152 = vlaneseq
    %v153 = vshrl.u32 %v152, 7
    %v154 = vsub.s32 %v151, %v153
    %v155 = vrot.slane %v78, %v154
    %vm156 = vcmask 261312
    %v157 = vsel %vm156, %v155, %v150
    %v158 = vadd.s32 %v132, 4294967264
    %v159 = vlaneseq
    %v160 = vshrl.u32 %v159, 7
    %v161 = vsub.s32 %v158, %v160
    %v162 = vrot.slane %v81, %v161
    %vm163 = vcmask 326912
    %v164 = vsel %vm163, %v162, %v157
    %v165 = vadd.s32 %v132, 4294967256
    %v166 = vlaneseq
    %v167 = vshrl.u32 %v166, 7
    %v168 = vsub.s32 %v165, %v167
    %v169 = vrot.slane %v84, %v168
    %vm170 = vcmask 392512
    %v171 = vsel %vm170, %v169, %v164
    %v172 = vadd.s32 %v132, 4294967248
    %v173 = vlaneseq
    %v174 = vshrl.u32 %v173, 7
    %v175 = vsub.s32 %v172, %v174
    %v176 = vrot.slane %v87, %v175
    %vm177 = vcmask 458112
    %v178 = vsel %vm177, %v176, %v171
    %v179 = vadd.s32 %v132, 4294967240
    %v180 = vlaneseq
    %v181 = vshrl.u32 %v180, 7
    %v182 = vsub.s32 %v179, %v181
    %v183 = vrot.slane %v90, %v182
    %vm184 = vcmask 523712
    %v185 = vsel %vm184, %v183, %v178
    %v186 = vlaneseq
    %v187 = vshrl.u32 %v186, 7
    %v188 = vsub.s32 %v132, %v187
    %v189 = vrot.slane %v93, %v188
    %v190 = vlaneseq
    %v191 = vshrl.u32 %v190, 7
    %v192 = vsub.s32 %v137, %v191
    %v193 = vrot.slane %v96, %v192
    %v194 = vsel %vm142, %v193, %v189
    %v195 = vlaneseq
    %v196 = vshrl.u32 %v195, 7
    %v197 = vsub.s32 %v144, %v196
    %v198 = vrot.slane %v99, %v197
    %v199 = vsel %vm149, %v198, %v194
    %v200 = vlaneseq
    %v201 = vshrl.u32 %v200, 7
    %v202 = vsub.s32 %v151, %v201
    %v203 = vrot.slane %v102, %v202
    %v204 = vsel %vm156, %v203, %v199
    %v205 = vlaneseq
    %v206 = vshrl.u32 %v205, 7
    %v207 = vsub.s32 %v158, %v206
    %v208 = vrot.slane %v105, %v207
    %v209 = vsel %vm163, %v208, %v204
    %v210 = vlaneseq
    %v211 = vshrl.u32 %v210, 7
    %v212 = vsub.s32 %v165, %v211
    %v213 = vrot.slane %v108, %v212
    %v214 = vsel %vm170, %v213, %v209
    %v215 = vlaneseq
    %v216 = vshrl.u32 %v215, 7
    %v217 = vsub.s32 %v172, %v216
    %v218 = vrot.slane %v111, %v217
    %v219 = vsel %vm177, %v218, %v214
    %v220 = vlaneseq
    %v221 = vshrl.u32 %v220, 7
    %v222 = vsub.s32 %v179, %v221
    %v223 = vrot.slane %v114, %v222
    %v224 = vsel %vm184, %v223, %v219
    %vm225 = vcmask 1041409
    %v226 = vsel %vm225, %v224, %v185
    %v228 = vadd.f32 %v65, %v226
    %vm229 = vcmask 517120
    %230 = vst.msk [vmem:[#allocation2] sm:$0x3] %vm229, %v228
    // Predicated region
    $region38: #{tpu_custom_call.1} parent=1 // pred_check
      %p231 = pneg %p43
    $region39: #{tpu_custom_call.1} parent=1 // pred_check_branch
      %233 = sbr.rel (%p231) target = $region41
    $region40: #{tpu_custom_call.1} parent=1 // pred_region
      %v234 = vld [vmem:[#allocation2] sm:$0x3]
      %v235 = vmul.f32 %v234, 0.015625
      %s236 = sld [smem:[#allocation3]]
      %vm237 = vcmp.ge.f32.partialorder %v235, 0.0
      %v238 = vstv %s236
      %v239 = vmul.f32 %v238, %v235
      %v240 = vsel %vm237, %v235, %v239
      %v241 = vld [vmem:[%s2] sm:$0xff]
      %v242 = vld [vmem:[%s2 + $0x8] sm:$0xff]
      %v243 = vld [vmem:[%s2 + $0x10] sm:$0xff]
      %v244 = vld [vmem:[%s2 + $0x18] sm:$0xff]
      %v245 = vld [vmem:[%s2 + $0x20] sm:$0xff]
      %v246 = vld [vmem:[%s2 + $0x28] sm:$0xff]
      %v247 = vld [vmem:[%s2 + $0x30] sm:$0xff]
      %v248 = vld [vmem:[%s2 + $0x38] sm:$0xff]
      %v250 = vsel %vm66, %v240, 0
      %252 = vmatprep.subr.mxu0 0.0
      %253 = vmatpush1.msra.mxu0 %v241
      %254 = vmatprep.subr.mxu0 0.0
      %255 = vmatpush1.msra.mxu0 %v242
      %256 = vmatprep.subr.mxu0 0.0
      %257 = vmatpush1.msra.mxu0 %v243
      %258 = vmatprep.subr.mxu0 0.0
      %259 = vmatpush1.msra.mxu0 %v244
      %260 = vmatprep.subr.mxu0 0.0
      %261 = vmatpush1.msra.mxu0 %v245
      %262 = vmatprep.subr.mxu0 0.0
      %263 = vmatpush1.msra.mxu0 %v246
      %264 = vmatprep.subr.mxu0 0.0
      %265 = vmatpush1.msra.mxu0 %v247
      %266 = vmatprep.subr.mxu0 0.0
      %267 = vmatpush1.msra.mxu0 %v248
      %268 = vmatprep.subr.mxu0 0.0
      %269 = vmatpush1.msra.mxu0 0.0
      %270 = vmatprep.subr.mxu0 0.0
      %271 = vmatpush1.msra.mxu0 0.0
      %272 = vmatprep.subr.mxu0 0.0
      %273 = vmatpush1.msra.mxu0 0.0
      %274 = vmatprep.subr.mxu0 0.0
      %275 = vmatpush1.msra.mxu0 0.0
      %276 = vmatprep.subr.mxu0 0.0
      %277 = vmatpush1.msra.mxu0 0.0
      %278 = vmatprep.subr.mxu0 0.0
      %279 = vmatpush1.msra.mxu0 0.0
      %280 = vmatprep.subr.mxu0 0.0
      %281 = vmatpush1.msra.mxu0 0.0
      %282 = vmatprep.subr.mxu0 0.0
      %283 = vmatpush1.msra.mxu0 0.0
      %284 = vmatprep.subr.mxu0 0.0
      %285 = vmatpush1.msra.mxu0 0.0
      %286 = vmatprep.subr.mxu0 0.0
      %287 = vmatpush1.msra.mxu0 0.0
      %288 = vmatprep.subr.mxu0 0.0
      %289 = vmatpush1.msra.mxu0 0.0
      %290 = vmatprep.subr.mxu0 0.0
      %291 = vmatpush1.msra.mxu0 0.0
      %292 = vmatprep.subr.mxu0 0.0
      %293 = vmatpush1.msra.mxu0 0.0
      %294 = vmatprep.subr.mxu0 0.0
      %295 = vmatpush1.msra.mxu0 0.0
      %296 = vmatprep.subr.mxu0 0.0
      %297 = vmatpush1.msra.mxu0 0.0
      %298 = vmatprep.subr.mxu0 0.0
      %299 = vmatpush1.msra.mxu0 0.0
      %300 = vmatprep.subr.mxu0 0.0
      %301 = vmatpush1.msra.mxu0 0.0
      %302 = vmatprep.subr.mxu0 0.0
      %303 = vmatpush1.msra.mxu0 0.0
      %304 = vmatprep.subr.mxu0 0.0
      %305 = vmatpush1.msra.mxu0 0.0
      %306 = vmatprep.subr.mxu0 0.0
      %307 = vmatpush1.msra.mxu0 0.0
      %308 = vmatprep.subr.mxu0 0.0
      %309 = vmatpush1.msra.mxu0 0.0
      %310 = vmatprep.subr.mxu0 0.0
      %311 = vmatpush1.msra.mxu0 0.0
      %312 = vmatprep.subr.mxu0 0.0
      %313 = vmatpush1.msra.mxu0 0.0
      %314 = vmatprep.subr.mxu0 0.0
      %315 = vmatpush1.msra.mxu0 0.0
      %316 = vmatprep.mubr.f32.mxu0 0.0
      %317 = vmatmul.mubr.f32.gmra.mrb[0].mxu0 %v250
      %v318 = vpop.f32.mrb[0].mxu0
      %v319 = vadd.f32 0.0, %v318
      %v320 = vpop.f32.mrb[0].mxu0
      %321 = vdwg.mxu0
      %s322 = sld [smem:[#allocation4]]
      %vm323 = vcmp.ge.f32.partialorder %v319, 0.0
      %v324 = vstv %s322
      %v325 = vmul.f32 %v324, %v319
      %v326 = vsel %vm323, %v319, %v325
      %v327 = vld [vmem:[%s4] sm:$0xf]
      %vm328 = vcmask 31744
      %v330 = vsel %vm328, %v326, 0
      %vm332 = vcmask 1043456
      %v334 = vsel %vm332, %v327, 0
      %336 = vmatprep.subr.mxu0 0.0
      %337 = vmatpush1.msra.mxu0 %v334
      %338 = vmatprep.subr.mxu0 0.0
      %339 = vmatpush1.msra.mxu0 0.0
      %340 = vmatprep.subr.mxu0 0.0
      %341 = vmatpush1.msra.mxu0 0.0
      %342 = vmatprep.subr.mxu0 0.0
      %343 = vmatpush1.msra.mxu0 0.0
      %344 = vmatprep.subr.mxu0 0.0
      %345 = vmatpush1.msra.mxu0 0.0
      %346 = vmatprep.subr.mxu0 0.0
      %347 = vmatpush1.msra.mxu0 0.0
      %348 = vmatprep.subr.mxu0 0.0
      %349 = vmatpush1.msra.mxu0 0.0
      %350 = vmatprep.subr.mxu0 0.0
      %351 = vmatpush1.msra.mxu0 0.0
      %352 = vmatprep.subr.mxu0 0.0
      %353 = vmatpush1.msra.mxu0 0.0
      %354 = vmatprep.subr.mxu0 0.0
      %355 = vmatpush1.msra.mxu0 0.0
      %356 = vmatprep.subr.mxu0 0.0
      %357 = vmatpush1.msra.mxu0 0.0
      %358 = vmatprep.subr.mxu0 0.0
      %359 = vmatpush1.msra.mxu0 0.0
      %360 = vmatprep.subr.mxu0 0.0
      %361 = vmatpush1.msra.mxu0 0.0
      %362 = vmatprep.subr.mxu0 0.0
      %363 = vmatpush1.msra.mxu0 0.0
      %364 = vmatprep.subr.mxu0 0.0
      %365 = vmatpush1.msra.mxu0 0.0
      %366 = vmatprep.subr.mxu0 0.0
      %367 = vmatpush1.msra.mxu0 0.0
      %368 = vmatprep.subr.mxu0 0.0
      %369 = vmatpush1.msra.mxu0 0.0
      %370 = vmatprep.subr.mxu0 0.0
      %371 = vmatpush1.msra.mxu0 0.0
      %372 = vmatprep.subr.mxu0 0.0
      %373 = vmatpush1.msra.mxu0 0.0
      %374 = vmatprep.subr.mxu0 0.0
      %375 = vmatpush1.msra.mxu0 0.0
      %376 = vmatprep.subr.mxu0 0.0
      %377 = vmatpush1.msra.mxu0 0.0
      %378 = vmatprep.subr.mxu0 0.0
      %379 = vmatpush1.msra.mxu0 0.0
      %380 = vmatprep.subr.mxu0 0.0
      %381 = vmatpush1.msra.mxu0 0.0
      %382 = vmatprep.subr.mxu0 0.0
      %383 = vmatpush1.msra.mxu0 0.0
      %384 = vmatprep.subr.mxu0 0.0
      %385 = vmatpush1.msra.mxu0 0.0
      %386 = vmatprep.subr.mxu0 0.0
      %387 = vmatpush1.msra.mxu0 0.0
      %388 = vmatprep.subr.mxu0 0.0
      %389 = vmatpush1.msra.mxu0 0.0
      %390 = vmatprep.subr.mxu0 0.0
      %391 = vmatpush1.msra.mxu0 0.0
      %392 = vmatprep.subr.mxu0 0.0
      %393 = vmatpush1.msra.mxu0 0.0
      %394 = vmatprep.subr.mxu0 0.0
      %395 = vmatpush1.msra.mxu0 0.0
      %396 = vmatprep.subr.mxu0 0.0
      %397 = vmatpush1.msra.mxu0 0.0
      %398 = vmatprep.subr.mxu0 0.0
      %399 = vmatpush1.msra.mxu0 0.0
      %400 = vmatprep.mubr.f32.mxu0 0.0
      %401 = vmatmul.mubr.f32.gmra.mrb[0].mxu0 %v330
      %v402 = vpop.f32.mrb[0].mxu0
      %v403 = vadd.f32 0.0, %v402
      %v404 = vpop.f32.mrb[0].mxu0
      %405 = vdwg.mxu0
      %v406 = vld [vmem:[%s5] sm:$0xff]
      %v407 = vld [vmem:[%s5 + $0x8] sm:$0xff]
      %v408 = vld [vmem:[%s5 + $0x10] sm:$0xff]
      %v409 = vld [vmem:[%s5 + $0x18] sm:$0xff]
      %vm410 = vcmask 261120
      %v412 = vsel %vm410, %v403, 0
      %414 = vmatprep.subr.mxu0 0.0
      %415 = vmatpush1.msra.mxu0 %v406
      %416 = vmatprep.subr.mxu0 0.0
      %417 = vmatpush1.msra.mxu0 %v407
      %418 = vmatprep.subr.mxu0 0.0
      %419 = vmatpush1.msra.mxu0 %v408
      %420 = vmatprep.subr.mxu0 0.0
      %421 = vmatpush1.msra.mxu0 %v409
      %422 = vmatprep.subr.mxu0 0.0
      %423 = vmatpush1.msra.mxu0 0.0
      %424 = vmatprep.subr.mxu0 0.0
      %425 = vmatpush1.msra.mxu0 0.0
      %426 = vmatprep.subr.mxu0 0.0
      %427 = vmatpush1.msra.mxu0 0.0
      %428 = vmatprep.subr.mxu0 0.0
      %429 = vmatpush1.msra.mxu0 0.0
      %430 = vmatprep.subr.mxu0 0.0
      %431 = vmatpush1.msra.mxu0 0.0
      %432 = vmatprep.subr.mxu0 0.0
      %433 = vmatpush1.msra.mxu0 0.0
      %434 = vmatprep.subr.mxu0 0.0
      %435 = vmatpush1.msra.mxu0 0.0
      %436 = vmatprep.subr.mxu0 0.0
      %437 = vmatpush1.msra.mxu0 0.0
      %438 = vmatprep.subr.mxu0 0.0
      %439 = vmatpush1.msra.mxu0 0.0
      %440 = vmatprep.subr.mxu0 0.0
      %441 = vmatpush1.msra.mxu0 0.0
      %442 = vmatprep.subr.mxu0 0.0
      %443 = vmatpush1.msra.mxu0 0.0
      %444 = vmatprep.subr.mxu0 0.0
      %445 = vmatpush1.msra.mxu0 0.0
      %446 = vmatprep.subr.mxu0 0.0
      %447 = vmatpush1.msra.mxu0 0.0
      %448 = vmatprep.subr.mxu0 0.0
      %449 = vmatpush1.msra.mxu0 0.0
      %450 = vmatprep.subr.mxu0 0.0
      %451 = vmatpush1.msra.mxu0 0.0
      %452 = vmatprep.subr.mxu0 0.0
      %453 = vmatpush1.msra.mxu0 0.0
      %454 = vmatprep.subr.mxu0 0.0
      %455 = vmatpush1.msra.mxu0 0.0
      %456 = vmatprep.subr.mxu0 0.0
      %457 = vmatpush1.msra.mxu0 0.0
      %458 = vmatprep.subr.mxu0 0.0
      %459 = vmatpush1.msra.mxu0 0.0
      %460 = vmatprep.subr.mxu0 0.0
      %461 = vmatpush1.msra.mxu0 0.0
      %462 = vmatprep.subr.mxu0 0.0
      %463 = vmatpush1.msra.mxu0 0.0
      %464 = vmatprep.subr.mxu0 0.0
      %465 = vmatpush1.msra.mxu0 0.0
      %466 = vmatprep.subr.mxu0 0.0
      %467 = vmatpush1.msra.mxu0 0.0
      %468 = vmatprep.subr.mxu0 0.0
      %469 = vmatpush1.msra.mxu0 0.0
      %470 = vmatprep.subr.mxu0 0.0
      %471 = vmatpush1.msra.mxu0 0.0
      %472 = vmatprep.subr.mxu0 0.0
      %473 = vmatpush1.msra.mxu0 0.0
      %474 = vmatprep.subr.mxu0 0.0
      %475 = vmatpush1.msra.mxu0 0.0
      %476 = vmatprep.subr.mxu0 0.0
      %477 = vmatpush1.msra.mxu0 0.0
      %478 = vmatprep.mubr.f32.mxu0 0.0
      %479 = vmatmul.mubr.f32.gmra.mrb[0].mxu0 %v412
      %v480 = vpop.f32.mrb[0].mxu0
      %v481 = vadd.f32 0.0, %v480
      %v482 = vpop.f32.mrb[0].mxu0
      %483 = vdwg.mxu0
      %v484 = vmul.f32 %v403, %v403
      %vm485 = vcmask 254976
      %v486 = vsel %vm485, %v484, 0.0
      %487 = vadd.xlane.f32.xlu0 %v486
      %v488 = vpop.xlane.xlu0 %487
      %v489 = vmax.f32 %v488, 1e-24
      %v490 = vrsqrt.pop %v489
      %v491 = vmul.f32 %v481, %v490
      %v492 = vld [vmem:[%s6] sm:$0x1]
      %v494 = vlaneseq
      %v495 = vshrl.u32 %v494, 7
      %v496 = vsub.s32 0, %v495
      %v497 = vrot.slane %v492, %v496
      %v499 = vmul.f32 %v491, %v497
      %500 = vst.msk [vmem:[#allocation8] sm:$0x3] %vm229, %v235
      %501 = vrot.lane.b32.xlu0 %v403, 64
      %v502 = vpop.permute.xlu0 %501
      %vm504 = vcmask 779776
      %505 = vst.msk [vmem:[#allocation8] sm:$0x3] %vm504, %v502
      %507 = vrot.lane.b32.xlu0 %v481, 96
      %v508 = vpop.permute.xlu0 %507
      %vm510 = vcmask 911104
      %511 = vst.msk [vmem:[#allocation8] sm:$0x3] %vm510, %v508
      %513 = vrot.lane.b32.xlu0 %v499, 112
      %v514 = vpop.permute.xlu0 %513
      %vm516 = vcmask 1042304
      %517 = vst.msk [vmem:[#allocation8] sm:$0x3] %vm516, %v514
    $region41: #{tpu_custom_call.1} parent=1 // pred_fallthru
      _
    // Predicated region
    $region42: #{tpu_custom_call.1} parent=1 // pred_check
      _
    $region43: #{tpu_custom_call.1} parent=1 // pred_check_branch
      %519 = sbr.rel (0) target = $region45
    $region44: #{tpu_custom_call.1} parent=1 // pred_region
      %s521 = ssub.s32 32, 32
      %522 = vsyncadd [#allocation7], %s521
      %s524 = sshll.u32 [#allocation8], 4
      %s525 = int_to_ptr.vmem [resolvable:$true] %s524
      %527 = dma.vmem_to_hbm [thread:$0]  %s525, 32, %s7, [#allocation7]
    $region45: #{tpu_custom_call.1} parent=1 // pred_fallthru
      _
    // Predicated region
    $region46: #{tpu_custom_call.1} parent=1 // pred_check
      _
    $region47: #{tpu_custom_call.1} parent=1 // pred_check_branch
      %529 = sbr.rel (0) target = $region49
    $region48: #{tpu_custom_call.1} parent=1 // pred_region
      %530 = dma.done [#allocation7], 32
    $region49: #{tpu_custom_call.1} parent=1 // pred_fallthru
      _
    %531 = vsyncpa [#allocation6], 1
    %532 = vsyncpa [#allocation7], 1

</llo_original>
